<compile_context>
chip_gen: v5e
topology: v5e:2x2
jax: 0.10.0
libtpu: 0.0.40
codegen_flags: <defaults>
</compile_context>

<pallas_src>
import functools

import jax
import jax.numpy as jnp
from jax import lax
from jax.experimental import pallas as pl
from jax.experimental.pallas import tpu as pltpu


def _leaky_relu(h, slope=0.2):
    return jnp.where(h >= 0, h, slope * h)


def disc_kernel(x_ref, w1_ref, b1_ref, w2_ref, b2_ref, w3_ref, b3_ref,
                inv_sigma_ref, out_ref):
    """One batch tile of the fused forward.

    x_ref:         (TM, D0)   activations, batch-major (streamed per grid step)
    w1_ref:        (D0, H1)   W1^T  (grid-invariant, VMEM resident)
    b1_ref:        (1, H1)
    w2_ref:        (H1, H2)   W2^T
    b2_ref:        (1, H2)
    w3_ref:        (1, H2)    final-layer weight row (PyTorch [out=1, in=H2])
    b3_ref:        (1, 1)
    inv_sigma_ref: (3,) f32 in SMEM  -- 1/sigma per layer
    out_ref:       (1, TM)    lane-dense sigmoid outputs (batch on lane axis)
    """
    x = x_ref[...]

    # layer 1: (x @ W1^T) * 1/sigma1 + b1, LeakyReLU(0.2).
    # 1/sigma scales the [TM, H1] output tile; resident weights untouched.
    h = jnp.dot(x, w1_ref[...], preferred_element_type=jnp.float32)
    h = _leaky_relu(h * inv_sigma_ref[0] + b1_ref[...])

    # layer 2
    h = jnp.dot(h.astype(w2_ref.dtype), w2_ref[...],
                preferred_element_type=jnp.float32)
    h = _leaky_relu(h * inv_sigma_ref[1] + b2_ref[...])

    # layer 3 (H2 -> 1), emitted transposed as (1, TM) so the store is a
    # lane-dense row instead of a masked 1-wide column.  dot_general contracts
    # the last dims of both operands (q @ k.T pattern), no explicit transpose.
    logits = lax.dot_general(
        w3_ref[...], h.astype(w3_ref.dtype),
        dimension_numbers=(((1,), (1,)), ((), ())),
        preferred_element_type=jnp.float32)                  # (1, TM)
    logits = logits * inv_sigma_ref[2] + b3_ref[...]

    # sigmoid: exp on the EUP, reciprocal (exact) also off the VALU.
    out_ref[...] = pl.reciprocal(1.0 + jnp.exp(-logits), approx=False)


def _l2_normalize(v, eps=1e-12):
    return v / jnp.maximum(jnp.sqrt(jnp.sum(v * v)), eps)


def spectral_sigma(w, u):
    """One PyTorch-style power iteration. w: [out, in], u: [out] -> sigma."""
    v = _l2_normalize(w.T @ u)
    u_new = _l2_normalize(w @ v)
    return u_new @ (w @ v)


def make_params(music_dim, hidden_dims, key):
    """PyTorch-Linear-style init (uniform(-1/sqrt(in), 1/sqrt(in))) + u vectors."""
    dims = [music_dim] + list(hidden_dims) + [1]
    params = []
    for i in range(len(dims) - 1):
        fan_in, fan_out = dims[i], dims[i + 1]
        key, kw, kb, ku = jax.random.split(key, 4)
        bound = 1.0 / jnp.sqrt(fan_in)
        w = jax.random.uniform(kw, (fan_out, fan_in), jnp.float32, -bound, bound)
        b = jax.random.uniform(kb, (fan_out,), jnp.float32, -bound, bound)
        u = _l2_normalize(jax.random.normal(ku, (fan_out,), jnp.float32))
        params.append((w, b, u))
    return params


@functools.partial(jax.jit, static_argnames=("block_m", "compute_dtype"))
def spectral_norm_discriminator(x, params, *, block_m=512,
                                compute_dtype=jnp.float32):
    """x: [B, music_dim] float32 -> [B, 1] float32 in (0, 1)."""
    (w1, b1, u1), (w2, b2, u2), (w3, b3, u3) = params
    B, D0 = x.shape
    H1, H2 = w1.shape[0], w2.shape[0]

    # --- power iteration -> 1/sigma per layer (same jit as the kernel, so the
    # tiny matvec HLOs fuse into a single dispatch with the pallas call).
    inv_sigmas = jnp.stack([
        1.0 / spectral_sigma(w1, u1),
        1.0 / spectral_sigma(w2, u2),
        1.0 / spectral_sigma(w3, u3),
    ]).astype(jnp.float32)

    # Weights pre-transposed to [in, out] so the hot loop is plain x @ W;
    # the final layer stays as a [1, H2] row. Biases as [1, out] rows.
    # compute_dtype=jnp.bfloat16 halves the x/weight HBM traffic on v6e/v7x
    # (accumulation stays f32); default f32 preserves module numerics.
    w1t = w1.T.astype(compute_dtype)
    w2t = w2.T.astype(compute_dtype)
    w3r = w3.astype(compute_dtype)            # (1, H2)
    b1r = b1[None, :].astype(jnp.float32)     # (1, H1)
    b2r = b2[None, :].astype(jnp.float32)     # (1, H2)
    b3r = b3[None, :].astype(jnp.float32)     # (1, 1)
    xc = x.astype(compute_dtype)

    # --- batch tiling: TM rows per grid step, batch padded to a tile multiple.
    if B <= block_m:
        tm = -(-B // 8) * 8                    # single block, sublane-aligned
    else:
        tm = max(128, (block_m // 128) * 128)  # multi-block: lane-dense output
    b_pad = -(-B // tm) * tm
    if b_pad != B:
        xc = jnp.pad(xc, ((0, b_pad - B), (0, 0)))
    grid = (b_pad // tm,)

    out_row = pl.pallas_call(
        disc_kernel,
        out_shape=jax.ShapeDtypeStruct((1, b_pad), jnp.float32),
        grid_spec=pltpu.PrefetchScalarGridSpec(
            num_scalar_prefetch=0,
            grid=grid,
            in_specs=[
                pl.BlockSpec((tm, D0), lambda i: (i, 0)),        # x: streamed
                pl.BlockSpec((D0, H1), lambda i: (0, 0)),        # W1^T resident
                pl.BlockSpec((1, H1), lambda i: (0, 0)),         # b1
                pl.BlockSpec((H1, H2), lambda i: (0, 0)),        # W2^T resident
                pl.BlockSpec((1, H2), lambda i: (0, 0)),         # b2
                pl.BlockSpec((1, H2), lambda i: (0, 0)),         # W3 row
                pl.BlockSpec((1, 1), lambda i: (0, 0)),          # b3
                pl.BlockSpec(memory_space=pltpu.MemorySpace.SMEM),  # 1/sigma
            ],
            out_specs=pl.BlockSpec((1, tm), lambda i: (0, i)),   # lane-dense
        ),
        compiler_params=pltpu.CompilerParams(
            dimension_semantics=("parallel",),   # shard batch over v7x's 2 TCs
        ),
    )(xc, w1t, b1r, w2t, b2r, w3r, b3r, inv_sigmas)

    return out_row[0, :B][:, None]


def reference_forward(x, params):
    """Pure-JAX reference with the module's semantics (scalar 1/sigma commutes
    exactly through the matmul in real arithmetic)."""
    (w1, b1, u1), (w2, b2, u2), (w3, b3, u3) = params
    s1 = 1.0 / spectral_sigma(w1, u1)
    s2 = 1.0 / spectral_sigma(w2, u2)
    s3 = 1.0 / spectral_sigma(w3, u3)
    h = _leaky_relu((x @ w1.T) * s1 + b1)
    h = _leaky_relu((h @ w2.T) * s2 + b2)
    logits = (h @ w3.T) * s3 + b3
    return 1.0 / (1.0 + jnp.exp(-logits))


if __name__ == "__main__":
    music_dim = 200            # matches the module's global
    hidden_dims = [64, 32]

    key = jax.random.PRNGKey(0)
    key, kx1, kx2 = jax.random.split(key, 3)
    params = make_params(music_dim, hidden_dims, key)

    # 1) small batch: single grid step
    x_small = jax.random.normal(kx1, (8, music_dim), jnp.float32)
    out_small = jax.block_until_ready(
        spectral_norm_discriminator(x_small, params))
    ref_small = reference_forward(x_small, params)
    assert out_small.shape == (8, 1)
    assert jnp.allclose(out_small, ref_small, atol=1e-5, rtol=1e-5), \
        "small-batch mismatch vs JAX reference"

    # 2) larger batch: exercises the batch grid (2 steps of 128 rows, parallel)
    x_big = jax.random.normal(kx2, (256, music_dim), jnp.float32)
    out_big = jax.block_until_ready(
        spectral_norm_discriminator(x_big, params, block_m=128))
    ref_big = reference_forward(x_big, params)
    assert out_big.shape == (256, 1)
    assert jnp.allclose(out_big, ref_big, atol=1e-5, rtol=1e-5), \
        "gridded-batch mismatch vs JAX reference"

    print("KERNEL_OK")
</pallas_src>

<mosaic_0001>
module attributes {stable_mosaic.version = 11 : i64} {
  func.func @disc_kernel(%arg0: i32, %arg1: memref<8x200xf32, #tpu.memory_space<vmem>>, %arg2: memref<200x64xf32, #tpu.memory_space<vmem>>, %arg3: memref<1x64xf32, #tpu.memory_space<vmem>>, %arg4: memref<64x32xf32, #tpu.memory_space<vmem>>, %arg5: memref<1x32xf32, #tpu.memory_space<vmem>>, %arg6: memref<1x32xf32, #tpu.memory_space<vmem>>, %arg7: memref<1x1xf32, #tpu.memory_space<vmem>>, %arg8: memref<3xf32, #tpu.memory_space<smem>>, %arg9: memref<1x8xf32, #tpu.memory_space<vmem>>) attributes {dimension_semantics = [#tpu.dimension_semantics<parallel>], iteration_bounds = array<i64: 1>, scalar_prefetch = 0 : i64, scratch_operands = 0 : i64, tpu.core_type = #tpu.core_type<tc>, window_params = [{transform_indices = @transform_0, window_bounds = array<i64: 8, 200>}, {pipeline_mode = #tpu.pipeline_mode<synchronous>, transform_indices = @transform_1, window_bounds = array<i64: 200, 64>}, {pipeline_mode = #tpu.pipeline_mode<synchronous>, transform_indices = @transform_2, window_bounds = array<i64: 1, 64>}, {pipeline_mode = #tpu.pipeline_mode<synchronous>, transform_indices = @transform_3, window_bounds = array<i64: 64, 32>}, {pipeline_mode = #tpu.pipeline_mode<synchronous>, transform_indices = @transform_4, window_bounds = array<i64: 1, 32>}, {pipeline_mode = #tpu.pipeline_mode<synchronous>, transform_indices = @transform_5, window_bounds = array<i64: 1, 32>}, {pipeline_mode = #tpu.pipeline_mode<synchronous>, transform_indices = @transform_6, window_bounds = array<i64: 1, 1>}, {transform_indices = @transform_7, window_bounds = array<i64: 3>}, {transform_indices = @transform_8, window_bounds = array<i64: 1, 8>}]} {
    %c0 = arith.constant 0 : index
    %c0_0 = arith.constant 0 : index
    %0 = vector.load %arg1[%c0, %c0_0] : memref<8x200xf32, #tpu.memory_space<vmem>>, vector<8x200xf32>
    %c0_1 = arith.constant 0 : index
    %c0_2 = arith.constant 0 : index
    %1 = vector.load %arg2[%c0_1, %c0_2] : memref<200x64xf32, #tpu.memory_space<vmem>>, vector<200x64xf32>
    %cst = arith.constant dense<0.000000e+00> : vector<8x64xf32>
    %2 = tpu.matmul %0, %1, %cst {dimension_numbers = #tpu.dot_dimension_numbers<[1], [0], [0], [1], [0, 0, 1, 1], [], []>} : vector<8x200xf32>, vector<200x64xf32>, vector<8x64xf32> -> vector<8x64xf32>
    %c0_3 = arith.constant 0 : index
    %3 = memref.load %arg8[%c0_3] : memref<3xf32, #tpu.memory_space<smem>>
    %4 = vector.broadcast %3 : f32 to vector<8x64xf32>
    %5 = arith.mulf %2, %4 : vector<8x64xf32>
    %c0_4 = arith.constant 0 : index
    %c0_5 = arith.constant 0 : index
    %6 = vector.load %arg3[%c0_4, %c0_5] : memref<1x64xf32, #tpu.memory_space<vmem>>, vector<1x64xf32>
    %7 = vector.broadcast %6 : vector<1x64xf32> to vector<8x64xf32>
    %8 = arith.addf %5, %7 : vector<8x64xf32>
    %cst_6 = arith.constant 0.000000e+00 : f32
    %9 = vector.broadcast %cst_6 : f32 to vector<8x64xf32>
    %10 = arith.cmpf oge, %8, %9 : vector<8x64xf32>
    %cst_7 = arith.constant 2.000000e-01 : f32
    %11 = vector.broadcast %cst_7 : f32 to vector<8x64xf32>
    %12 = arith.mulf %11, %8 : vector<8x64xf32>
    %13 = arith.select %10, %8, %12 : vector<8x64xi1>, vector<8x64xf32>
    %c0_8 = arith.constant 0 : index
    %c0_9 = arith.constant 0 : index
    %14 = vector.load %arg4[%c0_8, %c0_9] : memref<64x32xf32, #tpu.memory_space<vmem>>, vector<64x32xf32>
    %cst_10 = arith.constant dense<0.000000e+00> : vector<8x32xf32>
    %15 = tpu.matmul %13, %14, %cst_10 {dimension_numbers = #tpu.dot_dimension_numbers<[1], [0], [0], [1], [0, 0, 1, 1], [], []>} : vector<8x64xf32>, vector<64x32xf32>, vector<8x32xf32> -> vector<8x32xf32>
    %c1 = arith.constant 1 : index
    %16 = memref.load %arg8[%c1] : memref<3xf32, #tpu.memory_space<smem>>
    %17 = vector.broadcast %16 : f32 to vector<8x32xf32>
    %18 = arith.mulf %15, %17 : vector<8x32xf32>
    %c0_11 = arith.constant 0 : index
    %c0_12 = arith.constant 0 : index
    %19 = vector.load %arg5[%c0_11, %c0_12] : memref<1x32xf32, #tpu.memory_space<vmem>>, vector<1x32xf32>
    %20 = vector.broadcast %19 : vector<1x32xf32> to vector<8x32xf32>
    %21 = arith.addf %18, %20 : vector<8x32xf32>
    %cst_13 = arith.constant 0.000000e+00 : f32
    %22 = vector.broadcast %cst_13 : f32 to vector<8x32xf32>
    %23 = arith.cmpf oge, %21, %22 : vector<8x32xf32>
    %cst_14 = arith.constant 2.000000e-01 : f32
    %24 = vector.broadcast %cst_14 : f32 to vector<8x32xf32>
    %25 = arith.mulf %24, %21 : vector<8x32xf32>
    %26 = arith.select %23, %21, %25 : vector<8x32xi1>, vector<8x32xf32>
    %c0_15 = arith.constant 0 : index
    %c0_16 = arith.constant 0 : index
    %27 = vector.load %arg6[%c0_15, %c0_16] : memref<1x32xf32, #tpu.memory_space<vmem>>, vector<1x32xf32>
    %cst_17 = arith.constant dense<0.000000e+00> : vector<1x8xf32>
    %28 = tpu.matmul %27, %26, %cst_17 {dimension_numbers = #tpu.dot_dimension_numbers<[1], [1], [0], [0], [0, 0, 1, 0], [], []>} : vector<1x32xf32>, vector<8x32xf32>, vector<1x8xf32> -> vector<1x8xf32>
    %c2 = arith.constant 2 : index
    %29 = memref.load %arg8[%c2] : memref<3xf32, #tpu.memory_space<smem>>
    %30 = vector.broadcast %29 : f32 to vector<1x8xf32>
    %31 = arith.mulf %28, %30 : vector<1x8xf32>
    %c0_18 = arith.constant 0 : index
    %c0_19 = arith.constant 0 : index
    %32 = vector.load %arg7[%c0_18, %c0_19] : memref<1x1xf32, #tpu.memory_space<vmem>>, vector<1x1xf32>
    %33 = vector.broadcast %32 : vector<1x1xf32> to vector<1x8xf32>
    %34 = arith.addf %31, %33 : vector<1x8xf32>
    %cst_20 = arith.constant 0.000000e+00 : f32
    %35 = vector.broadcast %cst_20 : f32 to vector<1x8xf32>
    %36 = arith.subf %35, %34 : vector<1x8xf32>
    %37 = math.exp %36 : vector<1x8xf32>
    %cst_21 = arith.constant 1.000000e+00 : f32
    %38 = vector.broadcast %cst_21 : f32 to vector<1x8xf32>
    %39 = arith.addf %38, %37 : vector<1x8xf32>
    %40 = tpu.reciprocal %39 : vector<1x8xf32> -> vector<1x8xf32>
    %c0_22 = arith.constant 0 : index
    %c0_23 = arith.constant 0 : index
    %41 = vector.load %arg9[%c0_22, %c0_23] : memref<1x8xf32, #tpu.memory_space<vmem>>, vector<1x8xf32>
    tpu.vector_store %arg9[%c0_22, %c0_23], %40 {strides = array<i32>} : memref<1x8xf32, #tpu.memory_space<vmem>>, vector<1x8xf32>,
    return
  }
  func.func @transform_0(%arg0: i32) -> (i32, i32) {
    %c0_i32 = arith.constant 0 : i32
    %c0_i32_0 = arith.constant 0 : i32
    return %arg0, %c0_i32 : i32, i32
  }
  func.func @transform_1(%arg0: i32) -> (i32, i32) {
    %c0_i32 = arith.constant 0 : i32
    %c0_i32_0 = arith.constant 0 : i32
    %c0_i32_1 = arith.constant 0 : i32
    return %c0_i32, %c0_i32_0 : i32, i32
  }
  func.func @transform_2(%arg0: i32) -> (i32, i32) {
    %c0_i32 = arith.constant 0 : i32
    %c0_i32_0 = arith.constant 0 : i32
    %c0_i32_1 = arith.constant 0 : i32
    return %c0_i32, %c0_i32_0 : i32, i32
  }
  func.func @transform_3(%arg0: i32) -> (i32, i32) {
    %c0_i32 = arith.constant 0 : i32
    %c0_i32_0 = arith.constant 0 : i32
    %c0_i32_1 = arith.constant 0 : i32
    return %c0_i32, %c0_i32_0 : i32, i32
  }
  func.func @transform_4(%arg0: i32) -> (i32, i32) {
    %c0_i32 = arith.constant 0 : i32
    %c0_i32_0 = arith.constant 0 : i32
    %c0_i32_1 = arith.constant 0 : i32
    return %c0_i32, %c0_i32_0 : i32, i32
  }
  func.func @transform_5(%arg0: i32) -> (i32, i32) {
    %c0_i32 = arith.constant 0 : i32
    %c0_i32_0 = arith.constant 0 : i32
    %c0_i32_1 = arith.constant 0 : i32
    return %c0_i32, %c0_i32_0 : i32, i32
  }
  func.func @transform_6(%arg0: i32) -> (i32, i32) {
    %c0_i32 = arith.constant 0 : i32
    %c0_i32_0 = arith.constant 0 : i32
    %c0_i32_1 = arith.constant 0 : i32
    return %c0_i32, %c0_i32_0 : i32, i32
  }
  func.func @transform_7(%arg0: i32) -> i32 {
    %c0_i32 = arith.constant 0 : i32
    %c0_i32_0 = arith.constant 0 : i32
    return %c0_i32 : i32
  }
  func.func @transform_8(%arg0: i32) -> (i32, i32) {
    %c0_i32 = arith.constant 0 : i32
    %c0_i32_0 = arith.constant 0 : i32
    return %c0_i32, %arg0 : i32, i32
  }
}

</mosaic_0001>

<llo_original>
// kernel: spectral_norm_discriminator.1
$region0: #{spectral_norm_discriminator.1}
  #allocation0 [shape = 'u32[]', space=smem, size = 0x4, offset = 0x4, fixed_abs, tag = 'smem constant byte address 0x4 - core index']
  #allocation1 [shape = 'u32[72,128]{1,0:T(1,128)}', space=vmem, size = 0x9000, scoped, tag = 'internal scratch']
  #allocation2 [shape = 'f32[1,1]{1,0:T(1,128)S(1)}', space=vmem, size = 0x200, scoped, tag = 'scoped memory for spectral_norm_discriminator.1']
  %s0 = inlined_call_operand.vmem [shape: f32[8,200], index: 0, kind: input, shape index: {}]
  %s1 = inlined_call_operand.vmem [shape: f32[200,64], index: 1, kind: input, shape index: {}]
  %s2 = inlined_call_operand.vmem [shape: f32[1,64], index: 2, kind: input, shape index: {}]
  %s3 = inlined_call_operand.vmem [shape: f32[64,32], index: 3, kind: input, shape index: {}]
  %s4 = inlined_call_operand.vmem [shape: f32[1,32], index: 4, kind: input, shape index: {}]
  %s5 = inlined_call_operand.vmem [shape: f32[1,32], index: 5, kind: input, shape index: {}]
  %s6 = inlined_call_operand.<no memory space> [shape: f32[1,1], index: 6, kind: input, shape index: {}]
  %s7 = inlined_call_operand.vmem [shape: f32[3], index: 7, kind: input, shape index: {}]
  %s8 = inlined_call_operand.hbm [shape: f32[1,8], index: 8, kind: output, shape index: {}]
  %s9 = sld [smem:[#allocation0]]
  $region46: #{spectral_norm_discriminator.1} parent=0
    _
  %s11 = ssub.s32 1, %s9
  %s12 = scalar_select 0, %s11, %s9
  %v13 = vstv %s6
  %14 = vst [vmem:[#allocation2] sm:$0x1] %v13
  $region1: #{spectral_norm_discriminator.1} parent=0
    #allocation3 [shape = 'u8[512]{0}', space=smem, size = 0x200, scoped, tag = 'input window, operand 7, single buffered']
    #allocation4 [shape = 's32[1]{0}', space=sflag, size = 0x4, scoped, tag = 'scoped memory for spectral_norm_discriminator.1']
    #allocation5 [shape = 's32[1]{0}', space=sflag, size = 0x4, scoped, tag = 'scoped memory for spectral_norm_discriminator.1']
    #allocation6 [shape = 'u8[512]{0}', space=vmem, size = 0x400, scoped, tag = 'output window, operand 0, single buffered']
    %15 = vsyncpa [#allocation5], 0
    %16 = vsyncpa [#allocation4], 0
    // Predicated region
    $region2: #{spectral_norm_discriminator.1} parent=1 // pred_check
      _
    $region3: #{spectral_norm_discriminator.1} parent=1 // pred_check_branch
      %18 = sbr.rel (0) target = $region5
    $region4: #{spectral_norm_discriminator.1} parent=1 // pred_region
      _
    $region5: #{spectral_norm_discriminator.1} parent=1 // pred_fallthru
      _
    // Predicated region
    $region6: #{spectral_norm_discriminator.1} parent=1 // pred_check
      _
    $region7: #{spectral_norm_discriminator.1} parent=1 // pred_check_branch
      %20 = sbr.rel (0) target = $region9
    $region8: #{spectral_norm_discriminator.1} parent=1 // pred_region
      _
    $region9: #{spectral_norm_discriminator.1} parent=1 // pred_fallthru
      _
    // Predicated region
    $region10: #{spectral_norm_discriminator.1} parent=1 // pred_check
      _
    $region11: #{spectral_norm_discriminator.1} parent=1 // pred_check_branch
      %22 = sbr.rel (0) target = $region13
    $region12: #{spectral_norm_discriminator.1} parent=1 // pred_region
      _
    $region13: #{spectral_norm_discriminator.1} parent=1 // pred_fallthru
      _
    // Predicated region
    $region14: #{spectral_norm_discriminator.1} parent=1 // pred_check
      _
    $region15: #{spectral_norm_discriminator.1} parent=1 // pred_check_branch
      %24 = sbr.rel (0) target = $region17
    $region16: #{spectral_norm_discriminator.1} parent=1 // pred_region
      _
    $region17: #{spectral_norm_discriminator.1} parent=1 // pred_fallthru
      _
    // Predicated region
    $region18: #{spectral_norm_discriminator.1} parent=1 // pred_check
      _
    $region19: #{spectral_norm_discriminator.1} parent=1 // pred_check_branch
      %26 = sbr.rel (0) target = $region21
    $region20: #{spectral_norm_discriminator.1} parent=1 // pred_region
      _
    $region21: #{spectral_norm_discriminator.1} parent=1 // pred_fallthru
      _
    // Predicated region
    $region22: #{spectral_norm_discriminator.1} parent=1 // pred_check
      _
    $region23: #{spectral_norm_discriminator.1} parent=1 // pred_check_branch
      %28 = sbr.rel (0) target = $region25
    $region24: #{spectral_norm_discriminator.1} parent=1 // pred_region
      _
    $region25: #{spectral_norm_discriminator.1} parent=1 // pred_fallthru
      _
    // Predicated region
    $region26: #{spectral_norm_discriminator.1} parent=1 // pred_check
      _
    $region27: #{spectral_norm_discriminator.1} parent=1 // pred_check_branch
      %30 = sbr.rel (0) target = $region29
    $region28: #{spectral_norm_discriminator.1} parent=1 // pred_region
      _
    $region29: #{spectral_norm_discriminator.1} parent=1 // pred_fallthru
      _
    // Predicated region
    $region30: #{spectral_norm_discriminator.1} parent=1 // pred_check
      _
    $region31: #{spectral_norm_discriminator.1} parent=1 // pred_check_branch
      %32 = sbr.rel (0) target = $region33
    $region32: #{spectral_norm_discriminator.1} parent=1 // pred_region
      %34 = vsyncadd [#allocation5], 0
      %s36 = sshll.u32 %s7, 4
      %s37 = int_to_ptr.vmem [resolvable:$true] %s36
      %39 = dma.vmem_to_smem %s37, 16, [#allocation3], [#allocation5]
    $region33: #{spectral_norm_discriminator.1} parent=1 // pred_fallthru
      _
    // Predicated region
    $region34: #{spectral_norm_discriminator.1} parent=1 // pred_check
      _
    $region35: #{spectral_norm_discriminator.1} parent=1 // pred_check_branch
      %41 = sbr.rel (0) target = $region37
    $region36: #{spectral_norm_discriminator.1} parent=1 // pred_region
      %43 = dma.done [#allocation5], 16
    $region37: #{spectral_norm_discriminator.1} parent=1 // pred_fallthru
      _
    %44 = sfence
    %v45 = vld [vmem:[%s0] sm:$0xff]
    %v46 = vld [vmem:[%s0 + $0x8] sm:$0xff]
    %v47 = vld [vmem:[%s1] sm:$0xff]
    %v48 = vld [vmem:[%s1 + $0x8] sm:$0xff]
    %v49 = vld [vmem:[%s1 + $0x10] sm:$0xff]
    %v50 = vld [vmem:[%s1 + $0x18] sm:$0xff]
    %v51 = vld [vmem:[%s1 + $0x20] sm:$0xff]
    %v52 = vld [vmem:[%s1 + $0x28] sm:$0xff]
    %v53 = vld [vmem:[%s1 + $0x30] sm:$0xff]
    %v54 = vld [vmem:[%s1 + $0x38] sm:$0xff]
    %v55 = vld [vmem:[%s1 + $0x40] sm:$0xff]
    %v56 = vld [vmem:[%s1 + $0x48] sm:$0xff]
    %v57 = vld [vmem:[%s1 + $0x50] sm:$0xff]
    %v58 = vld [vmem:[%s1 + $0x58] sm:$0xff]
    %v59 = vld [vmem:[%s1 + $0x60] sm:$0xff]
    %v60 = vld [vmem:[%s1 + $0x68] sm:$0xff]
    %v61 = vld [vmem:[%s1 + $0x70] sm:$0xff]
    %v62 = vld [vmem:[%s1 + $0x78] sm:$0xff]
    %v63 = vld [vmem:[%s1 + $0x80] sm:$0xff]
    %v64 = vld [vmem:[%s1 + $0x88] sm:$0xff]
    %v65 = vld [vmem:[%s1 + $0x90] sm:$0xff]
    %v66 = vld [vmem:[%s1 + $0x98] sm:$0xff]
    %v67 = vld [vmem:[%s1 + $0xa0] sm:$0xff]
    %v68 = vld [vmem:[%s1 + $0xa8] sm:$0xff]
    %v69 = vld [vmem:[%s1 + $0xb0] sm:$0xff]
    %v70 = vld [vmem:[%s1 + $0xb8] sm:$0xff]
    %v71 = vld [vmem:[%s1 + $0xc0] sm:$0xff]
    %vm72 = vcmask 588800
    %v74 = vsel %vm72, %v46, 0
    %76 = vmatpush.msra.mxu0 %v62
    %77 = vmatpush.msra.mxu0 %v61
    %78 = vmatpush.msra.mxu0 %v60
    %79 = vmatpush.msra.mxu0 %v59
    %80 = vmatpush.msra.mxu0 %v58
    %81 = vmatpush.msra.mxu0 %v57
    %82 = vmatpush.msra.mxu0 %v56
    %83 = vmatpush.msra.mxu0 %v55
    %84 = vmatpush.msra.mxu0 %v54
    %85 = vmatpush.msra.mxu0 %v53
    %86 = vmatpush.msra.mxu0 %v52
    %87 = vmatpush.msra.mxu0 %v51
    %88 = vmatpush.msra.mxu0 %v50
    %89 = vmatpush.msra.mxu0 %v49
    %90 = vmatpush.msra.mxu0 %v48
    %91 = vmatpush.msra.mxu0 %v47
    %92 = vmatmul.f32.gmra.mxu0 %v45
    %v93 = vpop.f32.mrf.mxu0
    %v94 = vadd.f32 0.0, %v93
    %95 = vdwg.mxu0
    %96 = vmatpush.msra.mxu0 0.0
    %97 = vmatpush.msra.mxu0 0.0
    %98 = vmatpush.msra.mxu0 0.0
    %99 = vmatpush.msra.mxu0 0.0
    %100 = vmatpush.msra.mxu0 0.0
    %101 = vmatpush.msra.mxu0 0.0
    %102 = vmatpush.msra.mxu0 0.0
    %103 = vmatpush.msra.mxu0 %v71
    %104 = vmatpush.msra.mxu0 %v70
    %105 = vmatpush.msra.mxu0 %v69
    %106 = vmatpush.msra.mxu0 %v68
    %107 = vmatpush.msra.mxu0 %v67
    %108 = vmatpush.msra.mxu0 %v66
    %109 = vmatpush.msra.mxu0 %v65
    %110 = vmatpush.msra.mxu0 %v64
    %111 = vmatpush.msra.mxu0 %v63
    %112 = vmatmul.f32.gmra.mxu0 %v74
    %v113 = vpop.f32.mrf.mxu0
    %v114 = vadd.f32 %v94, %v113
    %115 = vdwg.mxu0
    %s116 = sld [smem:[#allocation3]]
    %v117 = vstv %s116
    %v118 = vmul.f32 %v114, %v117
    %v119 = vld [vmem:[%s2] sm:$0x1]
    %v121 = vperm.slane %v119, 0
    %v123 = vadd.f32 %v118, %v121
    %vm124 = vcmp.ge.f32.partialorder %v123, 0.0
    %v125 = vmul.f32 %v123, 0.2
    %v126 = vsel %vm124, %v123, %v125
    %v127 = vld [vmem:[%s3] sm:$0xff]
    %v128 = vld [vmem:[%s3 + $0x8] sm:$0xff]
    %v129 = vld [vmem:[%s3 + $0x10] sm:$0xff]
    %v130 = vld [vmem:[%s3 + $0x18] sm:$0xff]
    %v131 = vld [vmem:[%s3 + $0x20] sm:$0xff]
    %v132 = vld [vmem:[%s3 + $0x28] sm:$0xff]
    %v133 = vld [vmem:[%s3 + $0x30] sm:$0xff]
    %v134 = vld [vmem:[%s3 + $0x38] sm:$0xff]
    %vm135 = vcmask 523264
    %v137 = vsel %vm135, %v126, 0
    %139 = vmatpush.msra.mxu0 0.0
    %140 = vmatpush.msra.mxu0 0.0
    %141 = vmatpush.msra.mxu0 0.0
    %142 = vmatpush.msra.mxu0 0.0
    %143 = vmatpush.msra.mxu0 0.0
    %144 = vmatpush.msra.mxu0 0.0
    %145 = vmatpush.msra.mxu0 0.0
    %146 = vmatpush.msra.mxu0 0.0
    %147 = vmatpush.msra.mxu0 %v134
    %148 = vmatpush.msra.mxu0 %v133
    %149 = vmatpush.msra.mxu0 %v132
    %150 = vmatpush.msra.mxu0 %v131
    %151 = vmatpush.msra.mxu0 %v130
    %152 = vmatpush.msra.mxu0 %v129
    %153 = vmatpush.msra.mxu0 %v128
    %154 = vmatpush.msra.mxu0 %v127
    %155 = vmatmul.f32.gmra.mxu0 %v137
    %v156 = vpop.f32.mrf.mxu0
    %v157 = vadd.f32 0.0, %v156
    %158 = vdwg.mxu0
    %s159 = sld [smem:[#allocation3 + $0x1]]
    %v160 = vstv %s159
    %v161 = vmul.f32 %v157, %v160
    %v162 = vld [vmem:[%s4] sm:$0x1]
    %v164 = vperm.slane %v162, 0
    %v166 = vadd.f32 %v161, %v164
    %vm167 = vcmp.ge.f32.partialorder %v166, 0.0
    %v168 = vmul.f32 %v166, 0.2
    %v169 = vsel %vm167, %v166, %v168
    %v170 = vld [vmem:[%s5] sm:$0x1]
    %vm171 = vcmask 261120
    %v173 = vsel %vm171, %v170, 0
    %v176 = vsel %vm171, %v169, 0
    %178 = vmatpush.xpose.msra.mxu0 0.0
    %179 = vmatpush.xpose.msra.mxu0 0.0
    %180 = vmatpush.xpose.msra.mxu0 0.0
    %181 = vmatpush.xpose.msra.mxu0 0.0
    %182 = vmatpush.xpose.msra.mxu0 0.0
    %183 = vmatpush.xpose.msra.mxu0 0.0
    %184 = vmatpush.xpose.msra.mxu0 0.0
    %185 = vmatpush.xpose.msra.mxu0 0.0
    %186 = vmatpush.xpose.msra.mxu0 0.0
    %187 = vmatpush.xpose.msra.mxu0 0.0
    %188 = vmatpush.xpose.msra.mxu0 0.0
    %189 = vmatpush.xpose.msra.mxu0 0.0
    %190 = vmatpush.xpose.msra.mxu0 0.0
    %191 = vmatpush.xpose.msra.mxu0 0.0
    %192 = vmatpush.xpose.msra.mxu0 0.0
    %193 = vmatpush.xpose.msra.mxu0 %v176
    %194 = vmatmul.f32.gmra.mxu0 %v173
    %v195 = vpop.f32.mrf.mxu0
    %v196 = vadd.f32 0.0, %v195
    %197 = vdwg.mxu0
    %s198 = sld [smem:[#allocation3 + $0x2]]
    %v199 = vstv %s198
    %v200 = vmul.f32 %v196, %v199
    %v201 = vld [vmem:[#allocation2] sm:$0x1]
    %203 = vset.pattern.permute.xlu0 0
    %204 = vperm.xlu0 %203, %v201
    %v205 = vpop.permute.xlu0 %204
    %v207 = vperm.slane %v205, 0
    %v208 = vadd.f32 %v200, %v207
    %v209 = vsub.f32 0.0, %v208
    %v210 = vmul.f32 %v209, 1.442695
    %v211 = vpow.pop %v210
    %v212 = vadd.f32 %v211, 1.0
    %v213 = vrcp.pop %v212
    %v214 = vmul.f32 %v212, %v213
    %v215 = vsub.f32 1.0, %v214
    %v216 = vmul.f32 %v213, %v215
    %v217 = vadd.f32 %v213, %v216
    %vm218 = vweird.f32 %v212
    %vm219 = vweird.f32 %v213
    %vm220 = vmor %vm218, %vm219
    %v221 = vsel %vm220, %v213, %v217
    %v222 = vand.u32 2147483647, %v212
    %vm223 = vcmp.eq.f32.partialorder %v222, 8.507059e+37
    %v224 = vand.u32 %v212, 2147483648
    %v225 = vor.u32 1.1754944e-38, %v224
    %v226 = vsel %vm223, %v225, %v221
    %vm227 = vcmask 57344
    %228 = vst.msk [vmem:[#allocation6] sm:$0x1] %vm227, %v226
    // Predicated region
    $region38: #{spectral_norm_discriminator.1} parent=1 // pred_check
      _
    $region39: #{spectral_norm_discriminator.1} parent=1 // pred_check_branch
      %230 = sbr.rel (0) target = $region41
    $region40: #{spectral_norm_discriminator.1} parent=1 // pred_region
      %232 = vsyncadd [#allocation4], 0
      %s234 = sshll.u32 [#allocation6], 4
      %s235 = int_to_ptr.vmem [resolvable:$true] %s234
      %s236 = sshll.u32 %s8, 4
      %s237 = int_to_ptr.hbm [resolvable:$true] %s236
      %239 = dma.vmem_to_hbm [thread:$0]  %s235, 16, %s237, [#allocation4]
    $region41: #{spectral_norm_discriminator.1} parent=1 // pred_fallthru
      _
    // Predicated region
    $region42: #{spectral_norm_discriminator.1} parent=1 // pred_check
      _
    $region43: #{spectral_norm_discriminator.1} parent=1 // pred_check_branch
      %241 = sbr.rel (0) target = $region45
    $region44: #{spectral_norm_discriminator.1} parent=1 // pred_region
      %243 = dma.done [#allocation4], 16
    $region45: #{spectral_norm_discriminator.1} parent=1 // pred_fallthru
      _
    %244 = vsyncpa [#allocation4], 1
    %245 = vsyncpa [#allocation5], 1

</llo_original>
